<compile_context>
chip_gen: v5e
topology: v5e:2x2
jax: 0.10.0
libtpu: 0.0.40
codegen_flags: <defaults>
</compile_context>

<pallas_src>
import jax
import jax.numpy as jnp
from jax import lax
from jax.experimental import pallas as pl
from jax.experimental.pallas import tpu as pltpu


def _make_msc_kernel(img_w, use_bf16_matmul=False):
    """Kernel over one (1, C_eff, L) spatial tile (L = T*img_w, T % 4 == 0)."""

    def _dot(w_ref, v):
        w = w_ref[...]
        if use_bf16_matmul:              # full MXU rate on v6e/v7x (bf16 in,
            w = w.astype(jnp.bfloat16)   # f32 accumulate); loosen tolerance
            v = v.astype(jnp.bfloat16)   # to ~1e-2 if enabled.
        return jnp.dot(w, v, preferred_element_type=jnp.float32)

    def kernel(x_ref, mask_ref, w0_ref, w1_ref, w2_ref, b_ref, o_ref):
        x = x_ref[0]                      # (C_eff, L) f32, spatial on lanes
        L = x.shape[-1]

        # Parity masks precomputed in the wrapper (identical for every tile
        # because tiles start on 4-row boundaries): no per-step iota or
        # integer div/mod on the VPU, just four cheap compares.
        col_lo1 = mask_ref[0:1, :] != 0   # first column of a 2-wide group
        row_lo1 = mask_ref[1:2, :] != 0   # first row of a 2-high group
        col_lo2 = mask_ref[2:3, :] != 0   # first half of a 4-wide group
        row_lo2 = mask_ref[3:4, :] != 0   # first half of a 4-high group

        def paired_max(v, is_lo, s):
            # Max over partner chunks `s` lanes apart, broadcast to both.
            # pltpu.roll = XLU lane rotate (jnp.roll semantics); use L - s for
            # the "negative" shift to keep shifts non-negative.  The circular
            # wrap is always discarded by the parity masks.
            fwd = pltpu.roll(v, L - s, axis=1)   # element i+s -> i
            bwd = pltpu.roll(v, s, axis=1)       # element i-s -> i
            return jnp.maximum(v, jnp.where(is_lo, fwd, bwd))

        # Interleave the three matmuls with the pooling so temporaries die
        # early (x -> x1 -> x2); peak live (C_eff, L) arrays stays at ~2-3.
        y = _dot(w0_ref, x)

        # 2x2 maxpool + nearest upsample (width then height).
        x1 = paired_max(x, col_lo1, 1)
        x1 = paired_max(x1, row_lo1, img_w)
        y = y + _dot(w1_ref, x1)

        # 4x4 pool + upsample == 2x2 pool of the already-broadcast 2x2 result.
        x2 = paired_max(x1, col_lo2, 2)
        x2 = paired_max(x2, row_lo2, 2 * img_w)
        y = y + _dot(w2_ref, x2)

        y = jnp.maximum(y + b_ref[...], 0.0)      # bias + ReLU, (C_eff, L)
        o_ref[...] = y[None].astype(o_ref.dtype)

    return kernel


def _pick_rows_per_tile(n_imgs, H, W, C, budget_bytes=2 << 20):
    """Largest row tile T with T % 4 == 0, H % T == 0, lane-aligned flattened
    width (T*W % 128 == 0 unless T == H) and an f32 input tile <= budget_bytes
    (default 2 MiB: near the HBM-roofline plateau and safe for v7x's 64 MiB
    VMEM; v5e/v6e may pass 4-8 MiB).  Prefers >= 2 total grid steps so both
    v7x TensorCores get work.  If nothing fits the budget it falls back to the
    SMALLEST aligned tile (never an over-budget full image)."""
    cands = [t for t in range(4, H + 1, 4) if H % t == 0]
    # Lane-aligned candidates; t == H is always layout-legal (full array dim).
    cands = [t for t in cands if (t * W) % 128 == 0 or t == H]
    in_budget = [t for t in cands if C * t * W * 4 <= budget_bytes]
    pool = in_budget if in_budget else cands[:1]
    multi = [t for t in pool if n_imgs * (H // t) >= 2]
    if multi:
        pool = multi
    return max(pool)


def msc_forward(x_nchw, w_mat, bias, *, rows_per_tile=None,
                budget_bytes=2 << 20, use_bf16_matmul=False):
    """x_nchw: (N, C, H, W) f32; w_mat: (3C, C) [k, c_out]; bias: (C,) f32."""
    N, C, H, W = x_nchw.shape
    assert H % 4 == 0 and W % 4 == 0, "H, W must be divisible by 4"

    # Fold G images onto the sublane axis when C < 8 so f32 vregs are full.
    G = 1
    if C < 8 and 8 % C == 0 and N % (8 // C) == 0:
        G = 8 // C
    n_imgs = N // G
    c_eff = G * C

    T = rows_per_tile if rows_per_tile is not None else _pick_rows_per_tile(
        n_imgs, H, W, c_eff, budget_bytes)
    assert T % 4 == 0 and H % T == 0, "row tile must be a multiple of 4 dividing H"
    L = T * W
    n_tiles = H // T

    # Keep NCHW: flatten spatial and pack G images onto channels (free reshape).
    x_flat = x_nchw.reshape(n_imgs, c_eff, H * W)

    # Split the (3C, C_out) weight into three left-multiply (C_out, C_in)
    # pieces (no (3C, L) concat temp), block-diagonal over the G packed images
    # so channels never mix across images.
    def prep_w(k):
        w = jnp.transpose(w_mat[k * C:(k + 1) * C, :])       # (C_out, C_in)
        return jnp.kron(jnp.eye(G, dtype=w.dtype), w)         # (c_eff, c_eff)
    w0, w1, w2 = prep_w(0), prep_w(1), prep_w(2)
    b2d = jnp.tile(bias, G).reshape(c_eff, 1)

    # Tile-local parity masks, identical for every tile (T % 4 == 0), hoisted
    # out of the kernel: removes per-step iota + integer div/mod entirely.
    lane = jnp.arange(L, dtype=jnp.int32)
    col = lane % W
    row = lane // W
    masks = jnp.stack([(col & 1) == 0, (row & 1) == 0,
                       (col & 2) == 0, (row & 2) == 0]).astype(jnp.int32)

    out_flat = pl.pallas_call(
        _make_msc_kernel(W, use_bf16_matmul),
        out_shape=jax.ShapeDtypeStruct((n_imgs, c_eff, H * W), x_nchw.dtype),
        grid_spec=pl.GridSpec(
            grid=(n_imgs, n_tiles),
            in_specs=[
                pl.BlockSpec((1, c_eff, L), lambda n, s: (n, 0, s)),
                pl.BlockSpec((4, L), lambda n, s: (0, 0)),            # masks
                pl.BlockSpec((c_eff, c_eff), lambda n, s: (0, 0)),    # weights
                pl.BlockSpec((c_eff, c_eff), lambda n, s: (0, 0)),
                pl.BlockSpec((c_eff, c_eff), lambda n, s: (0, 0)),
                pl.BlockSpec((c_eff, 1), lambda n, s: (0, 0)),        # bias
            ],
            out_specs=pl.BlockSpec((1, c_eff, L), lambda n, s: (n, 0, s)),
        ),
        compiler_params=pltpu.CompilerParams(
            dimension_semantics=("parallel", "parallel"),
            vmem_limit_bytes=32 * 1024 * 1024,
        ),
    )(x_flat, masks, w0, w1, w2, b2d)

    return out_flat.reshape(N, C, H, W)


def msc_reference(x_nchw, w_mat, bias):
    """Pure-JAX reference mirroring the PyTorch module."""
    def pool_up(x, k):
        p = lax.reduce_window(x, -jnp.inf, lax.max,
                              (1, 1, k, k), (1, 1, k, k), "VALID")
        return jnp.repeat(jnp.repeat(p, k, axis=2), k, axis=3)
    x1 = pool_up(x_nchw, 2)
    x2 = pool_up(x_nchw, 4)
    cat = jnp.concatenate([x_nchw, x1, x2], axis=1)            # (N, 3C, H, W)
    y = jnp.einsum("nkhw,ko->nohw", cat, w_mat,
                   precision=lax.Precision.HIGHEST) + bias.reshape(1, -1, 1, 1)
    return jnp.maximum(y, 0.0)


if __name__ == "__main__":
    N, C, H, W = 2, 4, 16, 16
    key = jax.random.PRNGKey(0)
    kx, kw, kb = jax.random.split(key, 3)
    x = jax.random.normal(kx, (N, C, H, W), dtype=jnp.float32)
    # Conv2d(3C -> C, kernel_size=1) parameters in matmul form (3C, C_out).
    w_mat = jax.random.normal(kw, (3 * C, C), dtype=jnp.float32) * 0.1
    bias = jax.random.normal(kb, (C,), dtype=jnp.float32) * 0.1

    # Auto-picked tile: G=2 images packed onto sublanes (C_eff=8), T=8 rows
    # -> grid (1, 2), lane-dense L=128 blocks.
    out = jax.block_until_ready(msc_forward(x, w_mat, bias))
    ref = jax.block_until_ready(msc_reference(x, w_mat, bias))

    assert out.shape == (N, C, H, W)
    assert jnp.allclose(out, ref, atol=1e-3, rtol=1e-3), float(
        jnp.max(jnp.abs(out - ref)))
    print("KERNEL_OK")
</pallas_src>

<mosaic_0001>
module attributes {stable_mosaic.version = 11 : i64} {
  func.func @kernel(%arg0: i32, %arg1: i32, %arg2: memref<1x8x128xf32, #tpu.memory_space<vmem>>, %arg3: memref<4x128xi32, #tpu.memory_space<vmem>>, %arg4: memref<8x8xf32, #tpu.memory_space<vmem>>, %arg5: memref<8x8xf32, #tpu.memory_space<vmem>>, %arg6: memref<8x8xf32, #tpu.memory_space<vmem>>, %arg7: memref<8x1xf32, #tpu.memory_space<vmem>>, %arg8: memref<1x8x128xf32, #tpu.memory_space<vmem>>) attributes {dimension_semantics = [#tpu.dimension_semantics<parallel>, #tpu.dimension_semantics<parallel>], iteration_bounds = array<i64: 1, 2>, scalar_prefetch = 0 : i64, scratch_operands = 0 : i64, tpu.core_type = #tpu.core_type<tc>, window_params = [{transform_indices = @transform_0, window_bounds = array<i64: 1, 8, 128>}, {pipeline_mode = #tpu.pipeline_mode<synchronous>, transform_indices = @transform_1, window_bounds = array<i64: 4, 128>}, {pipeline_mode = #tpu.pipeline_mode<synchronous>, transform_indices = @transform_2, window_bounds = array<i64: 8, 8>}, {pipeline_mode = #tpu.pipeline_mode<synchronous>, transform_indices = @transform_3, window_bounds = array<i64: 8, 8>}, {pipeline_mode = #tpu.pipeline_mode<synchronous>, transform_indices = @transform_4, window_bounds = array<i64: 8, 8>}, {pipeline_mode = #tpu.pipeline_mode<synchronous>, transform_indices = @transform_5, window_bounds = array<i64: 8, 1>}, {transform_indices = @transform_6, window_bounds = array<i64: 1, 8, 128>}]} {
    %c0 = arith.constant 0 : index
    %c0_0 = arith.constant 0 : index
    %c0_1 = arith.constant 0 : index
    %0 = vector.load %arg2[%c0, %c0_0, %c0_1] : memref<1x8x128xf32, #tpu.memory_space<vmem>>, vector<1x8x128xf32>
    %1 = vector.shape_cast %0 : vector<1x8x128xf32> to vector<8x128xf32>
    %c0_2 = arith.constant 0 : index
    %c0_3 = arith.constant 0 : index
    %2 = vector.load %arg3[%c0_2, %c0_3] : memref<4x128xi32, #tpu.memory_space<vmem>>, vector<1x128xi32>
    %c0_i32 = arith.constant 0 : i32
    %3 = vector.broadcast %c0_i32 : i32 to vector<1x128xi32>
    %4 = arith.cmpi ne, %2, %3 : vector<1x128xi32>
    %c1 = arith.constant 1 : index
    %c0_4 = arith.constant 0 : index
    %5 = vector.load %arg3[%c1, %c0_4] : memref<4x128xi32, #tpu.memory_space<vmem>>, vector<1x128xi32>
    %c0_i32_5 = arith.constant 0 : i32
    %6 = vector.broadcast %c0_i32_5 : i32 to vector<1x128xi32>
    %7 = arith.cmpi ne, %5, %6 : vector<1x128xi32>
    %c2 = arith.constant 2 : index
    %c0_6 = arith.constant 0 : index
    %8 = vector.load %arg3[%c2, %c0_6] : memref<4x128xi32, #tpu.memory_space<vmem>>, vector<1x128xi32>
    %c0_i32_7 = arith.constant 0 : i32
    %9 = vector.broadcast %c0_i32_7 : i32 to vector<1x128xi32>
    %10 = arith.cmpi ne, %8, %9 : vector<1x128xi32>
    %c3 = arith.constant 3 : index
    %c0_8 = arith.constant 0 : index
    %11 = vector.load %arg3[%c3, %c0_8] : memref<4x128xi32, #tpu.memory_space<vmem>>, vector<1x128xi32>
    %c0_i32_9 = arith.constant 0 : i32
    %12 = vector.broadcast %c0_i32_9 : i32 to vector<1x128xi32>
    %13 = arith.cmpi ne, %11, %12 : vector<1x128xi32>
    %c0_10 = arith.constant 0 : index
    %c0_11 = arith.constant 0 : index
    %14 = vector.load %arg4[%c0_10, %c0_11] : memref<8x8xf32, #tpu.memory_space<vmem>>, vector<8x8xf32>
    %cst = arith.constant dense<0.000000e+00> : vector<8x128xf32>
    %15 = tpu.matmul %14, %1, %cst {dimension_numbers = #tpu.dot_dimension_numbers<[1], [0], [0], [1], [0, 0, 1, 1], [], []>} : vector<8x8xf32>, vector<8x128xf32>, vector<8x128xf32> -> vector<8x128xf32>
    %c127_i32 = arith.constant 127 : i32
    %16 = tpu.dynamic_rotate %1 by %c127_i32 dim 1 : vector<8x128xf32>, i32 -> vector<8x128xf32>
    %c1_i32 = arith.constant 1 : i32
    %17 = tpu.dynamic_rotate %1 by %c1_i32 dim 1 : vector<8x128xf32>, i32 -> vector<8x128xf32>
    %18 = vector.shape_cast %4 : vector<1x128xi1> to vector<1x128xi1>
    %19 = vector.broadcast %18 : vector<1x128xi1> to vector<8x128xi1>
    %20 = arith.select %19, %16, %17 : vector<8x128xi1>, vector<8x128xf32>
    %21 = arith.maximumf %1, %20 : vector<8x128xf32>
    %c112_i32 = arith.constant 112 : i32
    %22 = tpu.dynamic_rotate %21 by %c112_i32 dim 1 : vector<8x128xf32>, i32 -> vector<8x128xf32>
    %c16_i32 = arith.constant 16 : i32
    %23 = tpu.dynamic_rotate %21 by %c16_i32 dim 1 : vector<8x128xf32>, i32 -> vector<8x128xf32>
    %24 = vector.shape_cast %7 : vector<1x128xi1> to vector<1x128xi1>
    %25 = vector.broadcast %24 : vector<1x128xi1> to vector<8x128xi1>
    %26 = arith.select %25, %22, %23 : vector<8x128xi1>, vector<8x128xf32>
    %27 = arith.maximumf %21, %26 : vector<8x128xf32>
    %c0_12 = arith.constant 0 : index
    %c0_13 = arith.constant 0 : index
    %28 = vector.load %arg5[%c0_12, %c0_13] : memref<8x8xf32, #tpu.memory_space<vmem>>, vector<8x8xf32>
    %cst_14 = arith.constant dense<0.000000e+00> : vector<8x128xf32>
    %29 = tpu.matmul %28, %27, %cst_14 {dimension_numbers = #tpu.dot_dimension_numbers<[1], [0], [0], [1], [0, 0, 1, 1], [], []>} : vector<8x8xf32>, vector<8x128xf32>, vector<8x128xf32> -> vector<8x128xf32>
    %30 = arith.addf %15, %29 : vector<8x128xf32>
    %c126_i32 = arith.constant 126 : i32
    %31 = tpu.dynamic_rotate %27 by %c126_i32 dim 1 : vector<8x128xf32>, i32 -> vector<8x128xf32>
    %c2_i32 = arith.constant 2 : i32
    %32 = tpu.dynamic_rotate %27 by %c2_i32 dim 1 : vector<8x128xf32>, i32 -> vector<8x128xf32>
    %33 = vector.shape_cast %10 : vector<1x128xi1> to vector<1x128xi1>
    %34 = vector.broadcast %33 : vector<1x128xi1> to vector<8x128xi1>
    %35 = arith.select %34, %31, %32 : vector<8x128xi1>, vector<8x128xf32>
    %36 = arith.maximumf %27, %35 : vector<8x128xf32>
    %c96_i32 = arith.constant 96 : i32
    %37 = tpu.dynamic_rotate %36 by %c96_i32 dim 1 : vector<8x128xf32>, i32 -> vector<8x128xf32>
    %c32_i32 = arith.constant 32 : i32
    %38 = tpu.dynamic_rotate %36 by %c32_i32 dim 1 : vector<8x128xf32>, i32 -> vector<8x128xf32>
    %39 = vector.shape_cast %13 : vector<1x128xi1> to vector<1x128xi1>
    %40 = vector.broadcast %39 : vector<1x128xi1> to vector<8x128xi1>
    %41 = arith.select %40, %37, %38 : vector<8x128xi1>, vector<8x128xf32>
    %42 = arith.maximumf %36, %41 : vector<8x128xf32>
    %c0_15 = arith.constant 0 : index
    %c0_16 = arith.constant 0 : index
    %43 = vector.load %arg6[%c0_15, %c0_16] : memref<8x8xf32, #tpu.memory_space<vmem>>, vector<8x8xf32>
    %cst_17 = arith.constant dense<0.000000e+00> : vector<8x128xf32>
    %44 = tpu.matmul %43, %42, %cst_17 {dimension_numbers = #tpu.dot_dimension_numbers<[1], [0], [0], [1], [0, 0, 1, 1], [], []>} : vector<8x8xf32>, vector<8x128xf32>, vector<8x128xf32> -> vector<8x128xf32>
    %45 = arith.addf %30, %44 : vector<8x128xf32>
    %c0_18 = arith.constant 0 : index
    %c0_19 = arith.constant 0 : index
    %46 = vector.load %arg7[%c0_18, %c0_19] : memref<8x1xf32, #tpu.memory_space<vmem>>, vector<8x1xf32>
    %47 = vector.broadcast %46 : vector<8x1xf32> to vector<8x128xf32>
    %48 = arith.addf %45, %47 : vector<8x128xf32>
    %cst_20 = arith.constant 0.000000e+00 : f32
    %49 = vector.broadcast %cst_20 : f32 to vector<8x128xf32>
    %50 = arith.maximumf %48, %49 : vector<8x128xf32>
    %51 = vector.shape_cast %50 : vector<8x128xf32> to vector<1x8x128xf32>
    %c0_21 = arith.constant 0 : index
    %c0_22 = arith.constant 0 : index
    %c0_23 = arith.constant 0 : index
    %52 = vector.load %arg8[%c0_21, %c0_22, %c0_23] : memref<1x8x128xf32, #tpu.memory_space<vmem>>, vector<1x8x128xf32>
    tpu.vector_store %arg8[%c0_21, %c0_22, %c0_23], %51 {strides = array<i32>} : memref<1x8x128xf32, #tpu.memory_space<vmem>>, vector<1x8x128xf32>,
    return
  }
  func.func @transform_0(%arg0: i32, %arg1: i32) -> (i32, i32, i32) {
    %c0_i32 = arith.constant 0 : i32
    %c0_i32_0 = arith.constant 0 : i32
    return %arg0, %c0_i32, %arg1 : i32, i32, i32
  }
  func.func @transform_1(%arg0: i32, %arg1: i32) -> (i32, i32) {
    %c0_i32 = arith.constant 0 : i32
    %c0_i32_0 = arith.constant 0 : i32
    %c0_i32_1 = arith.constant 0 : i32
    return %c0_i32, %c0_i32_0 : i32, i32
  }
  func.func @transform_2(%arg0: i32, %arg1: i32) -> (i32, i32) {
    %c0_i32 = arith.constant 0 : i32
    %c0_i32_0 = arith.constant 0 : i32
    %c0_i32_1 = arith.constant 0 : i32
    return %c0_i32, %c0_i32_0 : i32, i32
  }
  func.func @transform_3(%arg0: i32, %arg1: i32) -> (i32, i32) {
    %c0_i32 = arith.constant 0 : i32
    %c0_i32_0 = arith.constant 0 : i32
    %c0_i32_1 = arith.constant 0 : i32
    return %c0_i32, %c0_i32_0 : i32, i32
  }
  func.func @transform_4(%arg0: i32, %arg1: i32) -> (i32, i32) {
    %c0_i32 = arith.constant 0 : i32
    %c0_i32_0 = arith.constant 0 : i32
    %c0_i32_1 = arith.constant 0 : i32
    return %c0_i32, %c0_i32_0 : i32, i32
  }
  func.func @transform_5(%arg0: i32, %arg1: i32) -> (i32, i32) {
    %c0_i32 = arith.constant 0 : i32
    %c0_i32_0 = arith.constant 0 : i32
    %c0_i32_1 = arith.constant 0 : i32
    return %c0_i32, %c0_i32_0 : i32, i32
  }
  func.func @transform_6(%arg0: i32, %arg1: i32) -> (i32, i32, i32) {
    %c0_i32 = arith.constant 0 : i32
    %c0_i32_0 = arith.constant 0 : i32
    return %arg0, %c0_i32, %arg1 : i32, i32, i32
  }
}

</mosaic_0001>

<llo_original>
// kernel: tpu_custom_call.1
$region0: #{tpu_custom_call.1}
  #allocation0 [shape = 'u32[]', space=smem, size = 0x4, offset = 0x4, fixed_abs, tag = 'smem constant byte address 0x4 - core index']
  #allocation1 [shape = 'u32[72,128]{1,0:T(1,128)}', space=vmem, size = 0x9000, scoped, tag = 'internal scratch']
  %s0 = inlined_call_operand.hbm [shape: f32[1,8,256], index: 0, kind: input, shape index: {}]
  %s1 = inlined_call_operand.hbm [shape: s32[4,128], index: 1, kind: input, shape index: {}]
  %s2 = inlined_call_operand.vmem [shape: f32[8,8], index: 2, kind: input, shape index: {}]
  %s3 = inlined_call_operand.hbm [shape: f32[8,8], index: 3, kind: input, shape index: {}]
  %s4 = inlined_call_operand.hbm [shape: f32[8,8], index: 4, kind: input, shape index: {}]
  %s5 = inlined_call_operand.vmem [shape: f32[8,1], index: 5, kind: input, shape index: {}]
  %s6 = inlined_call_operand.hbm [shape: f32[1,8,256], index: 6, kind: output, shape index: {}]
  %s7 = sld [smem:[#allocation0]]
  $region73: #{tpu_custom_call.1} parent=0
    _
  %s9 = ssub.s32 1, %s7
  %s10 = scalar_select 0, %s9, %s7
  $region1: #{tpu_custom_call.1} parent=0
    #allocation2 [shape = 'u8[8192]{0}', space=vmem, size = 0x2000, scoped, tag = 'input window, operand 0']
    #allocation3 [shape = 's32[2]{0}', space=sflag, size = 0x8, scoped, tag = 'scoped memory for tpu_custom_call.1']
    #allocation4 [shape = 's32[2]{0}', space=sflag, size = 0x8, scoped, tag = 'scoped memory for tpu_custom_call.1']
    #allocation5 [shape = 'u8[2048]{0}', space=vmem, size = 0x800, scoped, tag = 'input window, operand 1, single buffered']
    #allocation6 [shape = 's32[1]{0}', space=sflag, size = 0x4, scoped, tag = 'scoped memory for tpu_custom_call.1']
    #allocation7 [shape = 'u8[4096]{0}', space=vmem, size = 0x1000, scoped, tag = 'input window, operand 3, single buffered']
    #allocation8 [shape = 'u8[4096]{0}', space=vmem, size = 0x1000, scoped, tag = 'input window, operand 4, single buffered']
    #allocation9 [shape = 's32[1]{0}', space=sflag, size = 0x4, scoped, tag = 'scoped memory for tpu_custom_call.1']
    #allocation10 [shape = 'u8[8192]{0}', space=vmem, size = 0x2000, scoped, tag = 'output window, operand 0']
    %11 = vsyncpa [#allocation3], 0
    %s12 = scalar_lea.sflag [#allocation3], 1
    %13 = vsyncpa %s12, 0
    %14 = vsyncpa [#allocation6], 0
    %15 = vsyncpa [#allocation9], 0
    %16 = vsyncpa [#allocation4], 0
    %s17 = scalar_lea.sflag [#allocation4], 1
    %18 = vsyncpa %s17, 0
    loop: start=0, step=1, limit=4
    $region2: #{tpu_custom_call.1} parent=1 // loop_pre_header
      _
    $region3: #{tpu_custom_call.1} parent=1 // loop_header
      %s20 = sphi 0, %s24
      %p21 = scmp.ge.s32.totalorder %s20, 4
      %s27 = sphi 0, %s39
      %s28 = sphi 0, %s35
      %s29 = sphi 0, %s27
      %s30 = sphi 0, %s28
      %s31 = sphi 0, %s29
      %s32 = sphi 0, %s30
      %s44 = sphi 0, %s46
      %s47 = sphi 0, %s44
      %s48 = sphi 0, %s47
      %s64 = sphi 0, %s48
      %s68 = sphi 0, %s68
      %s70 = sphi 0, %s68
      %s71 = sphi 0, %s70
      %s85 = sphi 0, %s71
      %s89 = sphi 0, %s89
      %s91 = sphi 0, %s89
      %s92 = sphi 0, %s91
      %s106 = sphi 0, %s92
      %s110 = sphi 0, %s110
      %s112 = sphi 0, %s110
      %s113 = sphi 0, %s112
      %s127 = sphi 0, %s113
      %s131 = sphi 0, %s131
      %s133 = sphi 0, %s131
      %s134 = sphi 0, %s133
      %s148 = sphi 0, %s134
      %s152 = sphi 0, %s152
      %s154 = sphi 0, %s152
      %s155 = sphi 0, %s154
      %s169 = sphi 0, %s155
      %s177 = sphi 0, %s179
      %s180 = sphi 0, %s177
      %s181 = sphi 0, %s180
      %s197 = sphi 0, %s181
    $region4: #{tpu_custom_call.1} parent=1 // loop_header_branch
      %23 = sbr.rel (%p21) target = $region8
    $region5: #{tpu_custom_call.1} parent=1 // loop_body
      %s25 = ssub.s32 %s20, 1
      %s26 = ssub.s32 %s20, 2
      %s33 = sadd.s32 1, %s28
      %p34 = scmp.ge.s32.totalorder %s33, 2
      %s35 = scalar_select %p34, 0, %s33
      %s36 = sadd.s32 1, %s27
      %s37 = scalar_select %p34, %s36, %s27
      %p38 = scmp.ge.s32.totalorder %s37, 1
      %s39 = scalar_select %p38, 0, %s37
      %s40 = ssub.s32 %s27, %s39
      %s41 = ssub.s32 %s28, %s35
      %s42 = sor.u32 %s40, %s41
      %p43 = scmp.eq.s32.totalorder %s42, 0
      %s45 = sadd.s32 %s44, 1
      %s46 = scalar_select %p43, %s44, %s45
      %p49 = pneg %p43
      %p50 = scmp.eq.s32.totalorder %s20, 1
      %p51 = por %p49, %p50
      %p52 = scmp.ne.s32.totalorder %s44, %s47
      %p53 = scmp.eq.s32.totalorder %s20, 0
      %p54 = por %p52, %p53
      %p55 = scmp.ne.s32.totalorder %s44, %s47
      %p56 = scmp.eq.s32.totalorder %s25, 1
      %p57 = por %p55, %p56
      %p58 = scmp.ne.s32.totalorder %s47, %s48
      %p59 = scmp.eq.s32.totalorder %s25, 0
      %p60 = por %p58, %p59
      %p61 = scmp.ne.s32.totalorder %s47, %s48
      %p62 = scmp.eq.s32.totalorder %s26, 1
      %p63 = por %p61, %p62
      %p65 = scmp.ne.s32.totalorder %s48, %s64
      %p66 = scmp.eq.s32.totalorder %s26, 0
      %p67 = por %p65, %p66
      %s69 = sadd.s32 %s68, 1
      %p72 = scmp.eq.s32.totalorder %s20, 1
      %p73 = scmp.ne.s32.totalorder %s68, %s70
      %p74 = scmp.eq.s32.totalorder %s20, 0
      %p75 = por %p73, %p74
      %p76 = scmp.ne.s32.totalorder %s68, %s70
      %p77 = scmp.eq.s32.totalorder %s25, 1
      %p78 = por %p76, %p77
      %p79 = scmp.ne.s32.totalorder %s70, %s71
      %p80 = scmp.eq.s32.totalorder %s25, 0
      %p81 = por %p79, %p80
      %p82 = scmp.ne.s32.totalorder %s70, %s71
      %p83 = scmp.eq.s32.totalorder %s26, 1
      %p84 = por %p82, %p83
      %p86 = scmp.ne.s32.totalorder %s71, %s85
      %p87 = scmp.eq.s32.totalorder %s26, 0
      %p88 = por %p86, %p87
      %s90 = sadd.s32 %s89, 1
      %p93 = scmp.eq.s32.totalorder %s20, 1
      %p94 = scmp.ne.s32.totalorder %s89, %s91
      %p95 = scmp.eq.s32.totalorder %s20, 0
      %p96 = por %p94, %p95
      %p97 = scmp.ne.s32.totalorder %s89, %s91
      %p98 = scmp.eq.s32.totalorder %s25, 1
      %p99 = por %p97, %p98
      %p100 = scmp.ne.s32.totalorder %s91, %s92
      %p101 = scmp.eq.s32.totalorder %s25, 0
      %p102 = por %p100, %p101
      %p103 = scmp.ne.s32.totalorder %s91, %s92
      %p104 = scmp.eq.s32.totalorder %s26, 1
      %p105 = por %p103, %p104
      %p107 = scmp.ne.s32.totalorder %s92, %s106
      %p108 = scmp.eq.s32.totalorder %s26, 0
      %p109 = por %p107, %p108
      %s111 = sadd.s32 %s110, 1
      %p114 = scmp.eq.s32.totalorder %s20, 1
      %p115 = scmp.ne.s32.totalorder %s110, %s112
      %p116 = scmp.eq.s32.totalorder %s20, 0
      %p117 = por %p115, %p116
      %p118 = scmp.ne.s32.totalorder %s110, %s112
      %p119 = scmp.eq.s32.totalorder %s25, 1
      %p120 = por %p118, %p119
      %p121 = scmp.ne.s32.totalorder %s112, %s113
      %p122 = scmp.eq.s32.totalorder %s25, 0
      %p123 = por %p121, %p122
      %p124 = scmp.ne.s32.totalorder %s112, %s113
      %p125 = scmp.eq.s32.totalorder %s26, 1
      %p126 = por %p124, %p125
      %p128 = scmp.ne.s32.totalorder %s113, %s127
      %p129 = scmp.eq.s32.totalorder %s26, 0
      %p130 = por %p128, %p129
      %s132 = sadd.s32 %s131, 1
      %p135 = scmp.eq.s32.totalorder %s20, 1
      %p136 = scmp.ne.s32.totalorder %s131, %s133
      %p137 = scmp.eq.s32.totalorder %s20, 0
      %p138 = por %p136, %p137
      %p139 = scmp.ne.s32.totalorder %s131, %s133
      %p140 = scmp.eq.s32.totalorder %s25, 1
      %p141 = por %p139, %p140
      %p142 = scmp.ne.s32.totalorder %s133, %s134
      %p143 = scmp.eq.s32.totalorder %s25, 0
      %p144 = por %p142, %p143
      %p145 = scmp.ne.s32.totalorder %s133, %s134
      %p146 = scmp.eq.s32.totalorder %s26, 1
      %p147 = por %p145, %p146
      %p149 = scmp.ne.s32.totalorder %s134, %s148
      %p150 = scmp.eq.s32.totalorder %s26, 0
      %p151 = por %p149, %p150
      %s153 = sadd.s32 %s152, 1
      %p156 = scmp.eq.s32.totalorder %s20, 1
      %p157 = scmp.ne.s32.totalorder %s152, %s154
      %p158 = scmp.eq.s32.totalorder %s20, 0
      %p159 = por %p157, %p158
      %p160 = scmp.ne.s32.totalorder %s152, %s154
      %p161 = scmp.eq.s32.totalorder %s25, 1
      %p162 = por %p160, %p161
      %p163 = scmp.ne.s32.totalorder %s154, %s155
      %p164 = scmp.eq.s32.totalorder %s25, 0
      %p165 = por %p163, %p164
      %p166 = scmp.ne.s32.totalorder %s154, %s155
      %p167 = scmp.eq.s32.totalorder %s26, 1
      %p168 = por %p166, %p167
      %p170 = scmp.ne.s32.totalorder %s155, %s169
      %p171 = scmp.eq.s32.totalorder %s26, 0
      %p172 = por %p170, %p171
      %s173 = ssub.s32 %s27, %s39
      %s174 = ssub.s32 %s28, %s35
      %s175 = sor.u32 %s173, %s174
      %p176 = scmp.eq.s32.totalorder %s175, 0
      %s178 = sadd.s32 %s177, 1
      %s179 = scalar_select %p176, %s177, %s178
      %p182 = pneg %p176
      %p183 = scmp.eq.s32.totalorder %s20, 1
      %p184 = por %p182, %p183
      %p185 = scmp.ne.s32.totalorder %s177, %s180
      %p186 = scmp.eq.s32.totalorder %s20, 0
      %p187 = por %p185, %p186
      %p188 = scmp.ne.s32.totalorder %s177, %s180
      %p189 = scmp.eq.s32.totalorder %s25, 1
      %p190 = por %p188, %p189
      %p191 = scmp.ne.s32.totalorder %s180, %s181
      %p192 = scmp.eq.s32.totalorder %s25, 0
      %p193 = por %p191, %p192
      %p194 = scmp.ne.s32.totalorder %s180, %s181
      %p195 = scmp.eq.s32.totalorder %s26, 1
      %p196 = por %p194, %p195
      %p198 = scmp.ne.s32.totalorder %s181, %s197
      %p199 = scmp.eq.s32.totalorder %s26, 0
      %p200 = por %p198, %p199
      %p201 = scmp.le.s32.totalorder 1, %s20
      %p202 = scmp.lt.s32.totalorder %s20, 3
      %p203 = pnand %p201, %p202
      %p204 = pneg %p203
      // Predicated region
      $region9: #{tpu_custom_call.1} parent=5 // pred_check
        _
      $region10: #{tpu_custom_call.1} parent=5 // pred_check_branch
        %206 = sbr.rel (%p203) target = $region12
      $region11: #{tpu_custom_call.1} parent=5 // pred_region
        %s207 = ssub.s32 %s20, 1
        // Predicated region
        $region13: #{tpu_custom_call.1} parent=11 // pred_check
          %p208 = pneg %p81
        $region14: #{tpu_custom_call.1} parent=11 // pred_check_branch
          %210 = sbr.rel (%p208) target = $region16
        $region15: #{tpu_custom_call.1} parent=11 // pred_region
          %212 = vsyncadd [#allocation6], 0
          %s214 = sshll.u32 %s1, 4
          %s215 = int_to_ptr.hbm [resolvable:$true] %s214
          %s216 = sshll.u32 [#allocation5], 4
          %s217 = int_to_ptr.vmem [resolvable:$true] %s216
          %219 = dma.hbm_to_vmem [thread:$0]  %s215, 64, %s217, [#allocation6]
        $region16: #{tpu_custom_call.1} parent=11 // pred_fallthru
          _
        // Predicated region
        $region17: #{tpu_custom_call.1} parent=11 // pred_check
          %p220 = pneg %p102
        $region18: #{tpu_custom_call.1} parent=11 // pred_check_branch
          %222 = sbr.rel (%p220) target = $region20
        $region19: #{tpu_custom_call.1} parent=11 // pred_region
          _
        $region20: #{tpu_custom_call.1} parent=11 // pred_fallthru
          _
        // Predicated region
        $region21: #{tpu_custom_call.1} parent=11 // pred_check
          %p223 = pneg %p123
        $region22: #{tpu_custom_call.1} parent=11 // pred_check_branch
          %225 = sbr.rel (%p223) target = $region24
        $region23: #{tpu_custom_call.1} parent=11 // pred_region
          %227 = vsyncadd [#allocation6], 0
          %s229 = sshll.u32 %s3, 4
          %s230 = int_to_ptr.hbm [resolvable:$true] %s229
          %s231 = sshll.u32 [#allocation7], 4
          %s232 = int_to_ptr.vmem [resolvable:$true] %s231
          %234 = dma.hbm_to_vmem [thread:$0]  %s230, 128, %s232, [#allocation6]
        $region24: #{tpu_custom_call.1} parent=11 // pred_fallthru
          _
        // Predicated region
        $region25: #{tpu_custom_call.1} parent=11 // pred_check
          %p235 = pneg %p144
        $region26: #{tpu_custom_call.1} parent=11 // pred_check_branch
          %237 = sbr.rel (%p235) target = $region28
        $region27: #{tpu_custom_call.1} parent=11 // pred_region
          %239 = vsyncadd [#allocation9], 0
          %s241 = sshll.u32 %s4, 4
          %s242 = int_to_ptr.hbm [resolvable:$true] %s241
          %s243 = sshll.u32 [#allocation8], 4
          %s244 = int_to_ptr.vmem [resolvable:$true] %s243
          %246 = dma.hbm_to_vmem [thread:$0]  %s242, 128, %s244, [#allocation9]
        $region28: #{tpu_custom_call.1} parent=11 // pred_fallthru
          _
        // Predicated region
        $region29: #{tpu_custom_call.1} parent=11 // pred_check
          %p247 = pneg %p165
        $region30: #{tpu_custom_call.1} parent=11 // pred_check_branch
          %249 = sbr.rel (%p247) target = $region32
        $region31: #{tpu_custom_call.1} parent=11 // pred_region
          _
        $region32: #{tpu_custom_call.1} parent=11 // pred_fallthru
          _
      $region12: #{tpu_custom_call.1} parent=5 // pred_fallthru
        _
      %p250 = scmp.lt.s32.totalorder %s20, 2
      // Predicated region
      $region33: #{tpu_custom_call.1} parent=5 // pred_check
        %p251 = pneg %p250
      $region34: #{tpu_custom_call.1} parent=5 // pred_check_branch
        %253 = sbr.rel (%p251) target = $region36
      $region35: #{tpu_custom_call.1} parent=5 // pred_region
        // Predicated region
        $region37: #{tpu_custom_call.1} parent=35 // pred_check
          %p254 = pneg %p54
        $region38: #{tpu_custom_call.1} parent=35 // pred_check_branch
          %256 = sbr.rel (%p254) target = $region40
        $region39: #{tpu_custom_call.1} parent=35 // pred_region
          %s257 = sand.u32 %s44, 1
          %s258 = scalar_lea.sflag [#allocation3], %s257
          %s259 = sand.u32 %s44, 1
          %s260 = smul.addr %s259, 8
          %s261 = scalar_lea.vmem [#allocation2], %s260
          %263 = vsyncadd %s258, 0
          %s264 = smul.addr %s27, 2
          %s265 = sadd.s32 %s28, %s264
          %s266 = smul.addr %s265, 8
          %s267 = scalar_lea.hbm %s0, %s266
          %s269 = sshll.u32 %s267, 4
          %s270 = int_to_ptr.hbm [resolvable:$true] %s269
          %s271 = sshll.u32 %s261, 4
          %s272 = int_to_ptr.vmem [resolvable:$true] %s271
          %274 = dma.hbm_to_vmem [thread:$0]  %s270, 128, %s272, %s258
        $region40: #{tpu_custom_call.1} parent=35 // pred_fallthru
          _
      $region36: #{tpu_custom_call.1} parent=5 // pred_fallthru
        _
      %p275 = scmp.le.s32.totalorder 1, %s20
      %p276 = scmp.lt.s32.totalorder %s20, 3
      %p277 = pnand %p275, %p276
      %p278 = pneg %p277
      // Predicated region
      $region41: #{tpu_custom_call.1} parent=5 // pred_check
        _
      $region42: #{tpu_custom_call.1} parent=5 // pred_check_branch
        %280 = sbr.rel (%p277) target = $region44
      $region43: #{tpu_custom_call.1} parent=5 // pred_region
        %s281 = ssub.s32 %s20, 1
        %s282 = sand.u32 %s47, 1
        %s283 = scalar_lea.sflag [#allocation3], %s282
        %s284 = sand.u32 %s47, 1
        %s285 = smul.addr %s284, 8
        %s286 = scalar_lea.vmem [#allocation2], %s285
        // Predicated region
        $region45: #{tpu_custom_call.1} parent=43 // pred_check
          %p287 = pneg %p60
        $region46: #{tpu_custom_call.1} parent=43 // pred_check_branch
          %289 = sbr.rel (%p287) target = $region48
        $region47: #{tpu_custom_call.1} parent=43 // pred_region
          %291 = dma.done %s283, 128
        $region48: #{tpu_custom_call.1} parent=43 // pred_fallthru
          _
        // Predicated region
        $region49: #{tpu_custom_call.1} parent=43 // pred_check
          %p292 = pneg %p81
        $region50: #{tpu_custom_call.1} parent=43 // pred_check_branch
          %294 = sbr.rel (%p292) target = $region52
        $region51: #{tpu_custom_call.1} parent=43 // pred_region
          %296 = dma.done [#allocation6], 64
        $region52: #{tpu_custom_call.1} parent=43 // pred_fallthru
          _
        // Predicated region
        $region53: #{tpu_custom_call.1} parent=43 // pred_check
          %p297 = pneg %p123
        $region54: #{tpu_custom_call.1} parent=43 // pred_check_branch
          %299 = sbr.rel (%p297) target = $region56
        $region55: #{tpu_custom_call.1} parent=43 // pred_region
          %301 = dma.done [#allocation6], 128
        $region56: #{tpu_custom_call.1} parent=43 // pred_fallthru
          _
        // Predicated region
        $region57: #{tpu_custom_call.1} parent=43 // pred_check
          %p302 = pneg %p144
        $region58: #{tpu_custom_call.1} parent=43 // pred_check_branch
          %304 = sbr.rel (%p302) target = $region60
        $region59: #{tpu_custom_call.1} parent=43 // pred_region
          %306 = dma.done [#allocation9], 128
        $region60: #{tpu_custom_call.1} parent=43 // pred_fallthru
          _
        %s307 = sand.u32 %s47, 1
        %s308 = scalar_lea.sflag [#allocation3], %s307
        %s309 = sand.u32 %s47, 1
        %s310 = smul.addr %s309, 8
        %s311 = scalar_lea.vmem [#allocation2], %s310
        %p312 = pneg %p60
        %p313 = pneg %p57
        %p314 = pneg %p81
        %p315 = pneg %p78
        %p316 = pneg %p102
        %p317 = pneg %p99
        %p318 = pneg %p123
        %p319 = pneg %p120
        %p320 = pneg %p144
        %p321 = pneg %p141
        %p322 = pneg %p165
        %p323 = pneg %p162
        %p324 = pneg %p193
        %p325 = pneg %p190
        %s326 = sand.u32 %s180, 1
        %s327 = scalar_lea.sflag [#allocation4], %s326
        %s328 = sand.u32 %s180, 1
        %s329 = smul.addr %s328, 8
        %s330 = scalar_lea.vmem [#allocation10], %s329
        %v331 = vld [vmem:[%s286] sm:$0xff]
        %v332 = vld [vmem:[#allocation5] sm:$0x1]
        %vm333 = vcmp.ne.s32.totalorder %v332, 0
        %v334 = vld [vmem:[#allocation5 + $0x1] sm:$0x1]
        %vm335 = vcmp.ne.s32.totalorder %v334, 0
        %v336 = vld [vmem:[#allocation5 + $0x2] sm:$0x1]
        %vm337 = vcmp.ne.s32.totalorder %v336, 0
        %v338 = vld [vmem:[#allocation5 + $0x3] sm:$0x1]
        %vm339 = vcmp.ne.s32.totalorder %v338, 0
        %v340 = vld [vmem:[%s2] sm:$0xff]
        %341 = vrot.lane.b32.xlu0 %v331, 127
        %v342 = vpop.permute.xlu0 %341
        %343 = vrot.lane.b32.xlu0 %v331, 1
        %v344 = vpop.permute.xlu0 %343
        %v345 = vsel %vm333, 1, 0
        %v346 = vperm.slane %v345, 0
        %vm347 = vcmp.eq.s32.totalorder %v346, 1
        %v348 = vsel %vm347, %v342, %v344
        %v349 = vmax.f32 %v331, %v348
        %350 = vrot.lane.b32.xlu0 %v349, 112
        %v351 = vpop.permute.xlu0 %350
        %352 = vrot.lane.b32.xlu0 %v349, 16
        %v353 = vpop.permute.xlu0 %352
        %v354 = vsel %vm335, 1, 0
        %v355 = vperm.slane %v354, 0
        %vm356 = vcmp.eq.s32.totalorder %v355, 1
        %v357 = vsel %vm356, %v351, %v353
        %v358 = vmax.f32 %v349, %v357
        %v359 = vld [vmem:[#allocation7] sm:$0xff]
        %vm360 = vcmask 64512
        %v362 = vsel %vm360, %v359, 0
        %364 = vmatpush.msra.mxu0 0.0
        %365 = vmatpush.msra.mxu0 0.0
        %366 = vmatpush.msra.mxu0 0.0
        %367 = vmatpush.msra.mxu0 0.0
        %368 = vmatpush.msra.mxu0 0.0
        %369 = vmatpush.msra.mxu0 0.0
        %370 = vmatpush.msra.mxu0 0.0
        %371 = vmatpush.msra.mxu0 0.0
        %372 = vmatpush.msra.mxu0 0.0
        %373 = vmatpush.msra.mxu0 0.0
        %374 = vmatpush.msra.mxu0 0.0
        %375 = vmatpush.msra.mxu0 0.0
        %376 = vmatpush.msra.mxu0 0.0
        %377 = vmatpush.msra.mxu0 0.0
        %378 = vmatpush.msra.mxu0 0.0
        %379 = vmatpush.msra.mxu0 %v358
        %380 = vmatmul.f32.gmra.mxu0 %v362
        %v381 = vpop.f32.mrf.mxu0
        %v382 = vadd.f32 0.0, %v381
        %383 = vdwg.mxu0
        %v385 = vsel %vm360, %v340, 0
        %387 = vmatpush.msra.mxu0 0.0
        %388 = vmatpush.msra.mxu0 0.0
        %389 = vmatpush.msra.mxu0 0.0
        %390 = vmatpush.msra.mxu0 0.0
        %391 = vmatpush.msra.mxu0 0.0
        %392 = vmatpush.msra.mxu0 0.0
        %393 = vmatpush.msra.mxu0 0.0
        %394 = vmatpush.msra.mxu0 0.0
        %395 = vmatpush.msra.mxu0 0.0
        %396 = vmatpush.msra.mxu0 0.0
        %397 = vmatpush.msra.mxu0 0.0
        %398 = vmatpush.msra.mxu0 0.0
        %399 = vmatpush.msra.mxu0 0.0
        %400 = vmatpush.msra.mxu0 0.0
        %401 = vmatpush.msra.mxu0 0.0
        %402 = vmatpush.msra.mxu0 %v331
        %403 = vmatmul.f32.gmra.mxu0 %v385
        %v404 = vpop.f32.mrf.mxu0
        %v405 = vadd.f32 %v382, %v404
        %406 = vdwg.mxu0
        %407 = vrot.lane.b32.xlu0 %v358, 126
        %v408 = vpop.permute.xlu0 %407
        %409 = vrot.lane.b32.xlu0 %v358, 2
        %v410 = vpop.permute.xlu0 %409
        %v411 = vsel %vm337, 1, 0
        %v412 = vperm.slane %v411, 0
        %vm413 = vcmp.eq.s32.totalorder %v412, 1
        %v414 = vsel %vm413, %v408, %v410
        %v415 = vmax.f32 %v358, %v414
        %416 = vrot.lane.b32.xlu0 %v415, 96
        %v417 = vpop.permute.xlu0 %416
        %418 = vrot.lane.b32.xlu0 %v415, 32
        %v419 = vpop.permute.xlu0 %418
        %v420 = vsel %vm339, 1, 0
        %v421 = vperm.slane %v420, 0
        %vm422 = vcmp.eq.s32.totalorder %v421, 1
        %v423 = vsel %vm422, %v417, %v419
        %v424 = vmax.f32 %v415, %v423
        %v425 = vld [vmem:[#allocation8] sm:$0xff]
        %v427 = vsel %vm360, %v425, 0
        %429 = vmatpush.msra.mxu0 0.0
        %430 = vmatpush.msra.mxu0 0.0
        %431 = vmatpush.msra.mxu0 0.0
        %432 = vmatpush.msra.mxu0 0.0
        %433 = vmatpush.msra.mxu0 0.0
        %434 = vmatpush.msra.mxu0 0.0
        %435 = vmatpush.msra.mxu0 0.0
        %436 = vmatpush.msra.mxu0 0.0
        %437 = vmatpush.msra.mxu0 0.0
        %438 = vmatpush.msra.mxu0 0.0
        %439 = vmatpush.msra.mxu0 0.0
        %440 = vmatpush.msra.mxu0 0.0
        %441 = vmatpush.msra.mxu0 0.0
        %442 = vmatpush.msra.mxu0 0.0
        %443 = vmatpush.msra.mxu0 0.0
        %444 = vmatpush.msra.mxu0 %v424
        %445 = vmatmul.f32.gmra.mxu0 %v427
        %v446 = vpop.f32.mrf.mxu0
        %v447 = vadd.f32 0.0, %v446
        %448 = vdwg.mxu0
        %v449 = vadd.f32 %v405, %v447
        %v450 = vld [vmem:[%s5] sm:$0xff]
        %452 = vset.pattern.permute.xlu0 0
        %453 = vperm.xlu0 %452, %v450
        %v454 = vpop.permute.xlu0 %453
        %v456 = vadd.f32 %v449, %v454
        %v457 = vmax.f32 %v456, 0.0
        %458 = vst [vmem:[%s330] sm:$0xff] %v457
        %s459 = sand.u32 %s180, 1
        %s460 = scalar_lea.sflag [#allocation4], %s459
        %s461 = sand.u32 %s180, 1
        %s462 = smul.addr %s461, 8
        %s463 = scalar_lea.vmem [#allocation10], %s462
        // Predicated region
        $region61: #{tpu_custom_call.1} parent=43 // pred_check
          %p464 = pneg %p190
        $region62: #{tpu_custom_call.1} parent=43 // pred_check_branch
          %466 = sbr.rel (%p464) target = $region64
        $region63: #{tpu_custom_call.1} parent=43 // pred_region
          %468 = vsyncadd %s460, 0
          %s469 = smul.addr %s29, 2
          %s470 = sadd.s32 %s30, %s469
          %s471 = smul.addr %s470, 8
          %s472 = scalar_lea.hbm %s6, %s471
          %s474 = sshll.u32 %s463, 4
          %s475 = int_to_ptr.vmem [resolvable:$true] %s474
          %s476 = sshll.u32 %s472, 4
          %s477 = int_to_ptr.hbm [resolvable:$true] %s476
          %479 = dma.vmem_to_hbm [thread:$0]  %s475, 128, %s477, %s460
        $region64: #{tpu_custom_call.1} parent=43 // pred_fallthru
          _
      $region44: #{tpu_custom_call.1} parent=5 // pred_fallthru
        _
      %p480 = scmp.le.s32.totalorder 2, %s20
      // Predicated region
      $region65: #{tpu_custom_call.1} parent=5 // pred_check
        %p481 = pneg %p480
      $region66: #{tpu_custom_call.1} parent=5 // pred_check_branch
        %483 = sbr.rel (%p481) target = $region68
      $region67: #{tpu_custom_call.1} parent=5 // pred_region
        %s484 = ssub.s32 %s20, 2
        // Predicated region
        $region69: #{tpu_custom_call.1} parent=67 // pred_check
          %p485 = pneg %p196
        $region70: #{tpu_custom_call.1} parent=67 // pred_check_branch
          %487 = sbr.rel (%p485) target = $region72
        $region71: #{tpu_custom_call.1} parent=67 // pred_region
          %s488 = sand.u32 %s181, 1
          %s489 = scalar_lea.sflag [#allocation4], %s488
          %s490 = sand.u32 %s181, 1
          %s491 = smul.addr %s490, 8
          %s492 = scalar_lea.vmem [#allocation10], %s491
          %494 = dma.done %s489, 128
        $region72: #{tpu_custom_call.1} parent=67 // pred_fallthru
          _
      $region68: #{tpu_custom_call.1} parent=5 // pred_fallthru
        _
    $region6: #{tpu_custom_call.1} parent=1 // loop_footer
      %s24 = sadd.s32 1, %s20
    $region7: #{tpu_custom_call.1} parent=1 // loop_footer_branch
      %19 = sbr.rel target = $region3
    $region8: #{tpu_custom_call.1} parent=1 // loop_exit
      _
    %495 = vsyncpa [#allocation3], 1
    %s496 = scalar_lea.sflag [#allocation3], 1
    %497 = vsyncpa %s496, 1
    %498 = vsyncpa [#allocation6], 1
    %499 = vsyncpa [#allocation9], 1
    %500 = vsyncpa [#allocation4], 1
    %s501 = scalar_lea.sflag [#allocation4], 1
    %502 = vsyncpa %s501, 1

</llo_original>
